<compile_context>
chip_gen: v7x
topology: tpu7x:2x2x1
jax: 0.10.0
libtpu: 0.0.40
codegen_flags: <defaults>
</compile_context>

<pallas_src>
import jax
import jax.numpy as jnp
from jax.experimental import pallas as pl
from jax.experimental.pallas import tpu as pltpu

# ---------------- model hyperparameters (small, consistent with module) --------
N_EMBD = 192
NUM_HEADS = 4
HEAD_SIZE = 32
D_HEADS = NUM_HEADS * HEAD_SIZE      # 128
B = 2                                 # batch
T = 16                                # sequence length (<= block_size = 1150)


def _head_ids(idx, seg):
    """Segment id (idx // seg) over NUM_HEADS segments, via compares only."""
    out = jnp.zeros_like(idx)
    for h in range(1, NUM_HEADS):
        out = out + (idx >= h * seg).astype(jnp.int32)
    return out


# ---------------- fused Pallas kernel -------------------------------------------
def fused_mha_kernel(x_ref, wqkv_ref, wproj_ref, bproj_ref, o_ref):
    """x_ref:(BL*T,C)  wqkv:(C,3D) [scale folded into Q]  wproj:(D,C)
    bproj:(1,C)  o_ref:(BL*T,C).  BL = local batch elements in this grid step."""
    D = D_HEADS
    NT = NUM_HEADS * T
    bl = x_ref.shape[0] // T

    # One lane-dense QKV matmul over all local rows: (BL*T, C) @ (C, 3D).
    qkv = jnp.dot(x_ref[...], wqkv_ref[...], preferred_element_type=jnp.float32)

    # ---- constant masks (iota + compares; built once, reused per batch) -------
    col_nt = jax.lax.broadcasted_iota(jnp.int32, (T, NT), 1)
    row_q = jax.lax.broadcasted_iota(jnp.int32, (T, NT), 0)
    key_pos = col_nt - _head_ids(col_nt, T) * T          # position within segment
    causal = key_pos <= row_q                             # (T, NT) bool

    r_nt = jax.lax.broadcasted_iota(jnp.int32, (NT, D), 0)
    c_d = jax.lax.broadcasted_iota(jnp.int32, (NT, D), 1)
    bd_mask = (_head_ids(r_nt, T) == _head_ids(c_d, HEAD_SIZE)).astype(jnp.float32)

    outs = []
    for b in range(bl):                                   # static unroll (<= B)
        rows = slice(b * T, (b + 1) * T)
        q = qkv[rows, 0 * D:1 * D]                         # (T, D), pre-scaled
        k = qkv[rows, 1 * D:2 * D]
        v = qkv[rows, 2 * D:3 * D]

        # Block-diagonal stacked K / V slabs (NT, D): head h occupies rows
        # [h*T,(h+1)*T) x cols [h*Hs,(h+1)*Hs); zeros kill all cross-head terms.
        k_bd = jnp.tile(k, (NUM_HEADS, 1)) * bd_mask
        v_bd = jnp.tile(v, (NUM_HEADS, 1)) * bd_mask

        # All-head scores in one matmul: (T, D) x (NT, D)^T -> (T, NT).
        s = jax.lax.dot_general(q, k_bd, (((1,), (1,)), ((), ())),
                                preferred_element_type=jnp.float32)
        s = jnp.where(causal, s, -jnp.inf)
        # Per-row shift is constant across a row, hence softmax-invariant within
        # each head segment; diagonal is always unmasked so the max is finite.
        p = jnp.exp(s - jnp.max(s, axis=-1, keepdims=True))           # (T, NT)

        # Numerator (concatenated head outputs) and per-head softmax
        # denominators, both broadcast along the lane-dense D axis by matmul.
        num = jnp.dot(p, v_bd, preferred_element_type=jnp.float32)    # (T, D)
        den = jnp.dot(p, bd_mask, preferred_element_type=jnp.float32) # (T, D)
        outs.append(num * pl.reciprocal(den, approx=False))

    cat = outs[0] if bl == 1 else jnp.concatenate(outs, axis=0)       # (BL*T, D)

    y = jnp.dot(cat, wproj_ref[...], preferred_element_type=jnp.float32)
    o_ref[...] = (y + bproj_ref[...]).astype(o_ref.dtype)


# ---------------- parameter prep (one-time, outside the per-call path) ----------
def prepare_params(wq, wk, wv):
    """Stack per-head Q/K/V weights (NH, C, Hs) into one (C, 3*NH*Hs) matrix and
    fold the 1/sqrt(head_size) attention scale into the Q columns."""
    C = wq.shape[1]

    def stack(w):                       # (NH, C, Hs) -> (C, NH*Hs), head-major lanes
        return jnp.transpose(w, (1, 0, 2)).reshape(C, -1)

    scale = HEAD_SIZE ** -0.5
    return jnp.concatenate([stack(wq) * scale, stack(wk), stack(wv)], axis=-1)


def _batch_grid(batch):
    """grid=(B,) 'parallel' only pays off on 2-TensorCore chips (v7x); on
    single-TC v5e/v6e the extra grid steps are pure pipeline overhead."""
    try:
        two_core = "v7" in jax.devices()[0].device_kind.lower()
    except Exception:
        two_core = False
    return batch if (two_core and batch > 1) else 1


# ---------------- wrapper --------------------------------------------------------
@jax.jit
def multi_head_attention(x, w_qkv, w_proj, b_proj):
    """x: (B, T, C); w_qkv: (C, 3*NH*Hs) from prepare_params;
    w_proj: (NH*Hs, C); b_proj: (1, C)."""
    Bb, Tt, C = x.shape
    D = D_HEADS
    assert Tt == T and C == N_EMBD and w_qkv.shape == (C, 3 * D)

    G = _batch_grid(Bb)
    rows = (Bb // G) * Tt                 # rows handled per grid step
    x2 = x.reshape(Bb * Tt, C)            # lane-dense 2-D slab

    out2 = pl.pallas_call(
        fused_mha_kernel,
        out_shape=jax.ShapeDtypeStruct((Bb * Tt, C), x.dtype),
        grid=(G,),
        in_specs=[
            pl.BlockSpec((rows, C), lambda g: (g, 0)),     # x slab
            pl.BlockSpec((C, 3 * D), lambda g: (0, 0)),    # fused QKV weight
            pl.BlockSpec((D, C), lambda g: (0, 0)),        # projection weight
            pl.BlockSpec((1, C), lambda g: (0, 0)),        # projection bias
        ],
        out_specs=pl.BlockSpec((rows, C), lambda g: (g, 0)),
        compiler_params=pltpu.CompilerParams(
            dimension_semantics=("parallel",)),
    )(x2, w_qkv, w_proj, b_proj)
    return out2.reshape(Bb, Tt, C)


# ---------------- plain-JAX reference (PyTorch forward, eval mode) ---------------
def reference(x, wq, wk, wv, w_proj, b_proj):
    hp = jax.lax.Precision.HIGHEST
    q = jnp.einsum('btc,hcd->bhtd', x, wq, precision=hp)
    k = jnp.einsum('btc,hcd->bhtd', x, wk, precision=hp)
    v = jnp.einsum('btc,hcd->bhtd', x, wv, precision=hp)
    wei = jnp.einsum('bhtd,bhsd->bhts', q, k, precision=hp) * (k.shape[-1] ** -0.5)
    t = x.shape[1]
    mask = jnp.tril(jnp.ones((t, t), dtype=bool))
    wei = jnp.where(mask[None, None], wei, -jnp.inf)
    wei = jax.nn.softmax(wei, axis=-1)
    o = jnp.einsum('bhts,bhsd->bhtd', wei, v, precision=hp)
    cat = jnp.transpose(o, (0, 2, 1, 3)).reshape(x.shape[0], t, -1)
    return jnp.einsum('btd,dc->btc', cat, w_proj, precision=hp) + b_proj


# ---------------- main ------------------------------------------------------------
if __name__ == "__main__":
    key = jax.random.PRNGKey(0)
    kx, kq, kk, kv, kw, kb = jax.random.split(key, 6)

    x = jax.random.normal(kx, (B, T, N_EMBD), dtype=jnp.float32)
    # deterministic synthetic parameters (nn.Linear weights stored transposed)
    wq = 0.02 * jax.random.normal(kq, (NUM_HEADS, N_EMBD, HEAD_SIZE), jnp.float32)
    wk = 0.02 * jax.random.normal(kk, (NUM_HEADS, N_EMBD, HEAD_SIZE), jnp.float32)
    wv = 0.02 * jax.random.normal(kv, (NUM_HEADS, N_EMBD, HEAD_SIZE), jnp.float32)
    w_proj = 0.02 * jax.random.normal(kw, (D_HEADS, N_EMBD), jnp.float32)
    b_proj = 0.02 * jax.random.normal(kb, (1, N_EMBD), jnp.float32)

    # one-time parameter prep (hoisted out of the per-forward path)
    w_qkv = jax.block_until_ready(prepare_params(wq, wk, wv))

    out = multi_head_attention(x, w_qkv, w_proj, b_proj)
    out = jax.block_until_ready(out)

    ref = reference(x, wq, wk, wv, w_proj, b_proj)
    assert out.shape == (B, T, N_EMBD)
    assert jnp.allclose(out, ref, atol=1e-5, rtol=1e-5), (
        "mismatch vs reference: max abs err = "
        f"{float(jnp.max(jnp.abs(out - ref)))}")

    print("KERNEL_OK")
</pallas_src>

<mosaic_0001>
module attributes {stable_mosaic.version = 11 : i64} {
  func.func @fused_mha_kernel(%arg0: i32, %arg1: memref<32x192xf32, #tpu.memory_space<vmem>>, %arg2: memref<192x384xf32, #tpu.memory_space<vmem>>, %arg3: memref<128x192xf32, #tpu.memory_space<vmem>>, %arg4: memref<1x192xf32, #tpu.memory_space<vmem>>, %arg5: memref<32x192xf32, #tpu.memory_space<vmem>>) attributes {dimension_semantics = [#tpu.dimension_semantics<parallel>], iteration_bounds = array<i64: 1>, scalar_prefetch = 0 : i64, scratch_operands = 0 : i64, tpu.core_type = #tpu.core_type<tc>, window_params = [{transform_indices = @transform_0, window_bounds = array<i64: 32, 192>}, {pipeline_mode = #tpu.pipeline_mode<synchronous>, transform_indices = @transform_1, window_bounds = array<i64: 192, 384>}, {pipeline_mode = #tpu.pipeline_mode<synchronous>, transform_indices = @transform_2, window_bounds = array<i64: 128, 192>}, {pipeline_mode = #tpu.pipeline_mode<synchronous>, transform_indices = @transform_3, window_bounds = array<i64: 1, 192>}, {transform_indices = @transform_4, window_bounds = array<i64: 32, 192>}]} {
    %c0 = arith.constant 0 : index
    %c0_0 = arith.constant 0 : index
    %0 = vector.load %arg1[%c0, %c0_0] : memref<32x192xf32, #tpu.memory_space<vmem>>, vector<32x192xf32>
    %c0_1 = arith.constant 0 : index
    %c0_2 = arith.constant 0 : index
    %1 = vector.load %arg2[%c0_1, %c0_2] : memref<192x384xf32, #tpu.memory_space<vmem>>, vector<192x384xf32>
    %cst = arith.constant dense<0.000000e+00> : vector<32x384xf32>
    %2 = tpu.matmul %0, %1, %cst {dimension_numbers = #tpu.dot_dimension_numbers<[1], [0], [0], [1], [0, 0, 1, 1], [], []>} : vector<32x192xf32>, vector<192x384xf32>, vector<32x384xf32> -> vector<32x384xf32>
    %3 = tpu.iota {dimensions = array<i32: 1>} : vector<16x64xi32>
    %4 = tpu.iota {dimensions = array<i32: 0>} : vector<16x64xi32>
    %c0_i32 = arith.constant 0 : i32
    %5 = vector.broadcast %c0_i32 : i32 to vector<16x64xi32>
    %c16_i32 = arith.constant 16 : i32
    %6 = vector.broadcast %c16_i32 : i32 to vector<16x64xi32>
    %7 = arith.cmpi sge, %3, %6 : vector<16x64xi32>
    %8 = arith.extui %7 : vector<16x64xi1> to vector<16x64xi32>
    %9 = arith.addi %5, %8 : vector<16x64xi32>
    %c32_i32 = arith.constant 32 : i32
    %10 = vector.broadcast %c32_i32 : i32 to vector<16x64xi32>
    %11 = arith.cmpi sge, %3, %10 : vector<16x64xi32>
    %12 = arith.extui %11 : vector<16x64xi1> to vector<16x64xi32>
    %13 = arith.addi %9, %12 : vector<16x64xi32>
    %c48_i32 = arith.constant 48 : i32
    %14 = vector.broadcast %c48_i32 : i32 to vector<16x64xi32>
    %15 = arith.cmpi sge, %3, %14 : vector<16x64xi32>
    %16 = arith.extui %15 : vector<16x64xi1> to vector<16x64xi32>
    %17 = arith.addi %13, %16 : vector<16x64xi32>
    %c16_i32_3 = arith.constant 16 : i32
    %18 = vector.broadcast %c16_i32_3 : i32 to vector<16x64xi32>
    %19 = arith.muli %17, %18 : vector<16x64xi32>
    %20 = arith.subi %3, %19 : vector<16x64xi32>
    %21 = arith.cmpi sle, %20, %4 : vector<16x64xi32>
    %22 = tpu.iota {dimensions = array<i32: 0>} : vector<64x128xi32>
    %23 = tpu.iota {dimensions = array<i32: 1>} : vector<64x128xi32>
    %c0_i32_4 = arith.constant 0 : i32
    %24 = vector.broadcast %c0_i32_4 : i32 to vector<64x128xi32>
    %c16_i32_5 = arith.constant 16 : i32
    %25 = vector.broadcast %c16_i32_5 : i32 to vector<64x128xi32>
    %26 = arith.cmpi sge, %22, %25 : vector<64x128xi32>
    %27 = arith.extui %26 : vector<64x128xi1> to vector<64x128xi32>
    %28 = arith.addi %24, %27 : vector<64x128xi32>
    %c32_i32_6 = arith.constant 32 : i32
    %29 = vector.broadcast %c32_i32_6 : i32 to vector<64x128xi32>
    %30 = arith.cmpi sge, %22, %29 : vector<64x128xi32>
    %31 = arith.extui %30 : vector<64x128xi1> to vector<64x128xi32>
    %32 = arith.addi %28, %31 : vector<64x128xi32>
    %c48_i32_7 = arith.constant 48 : i32
    %33 = vector.broadcast %c48_i32_7 : i32 to vector<64x128xi32>
    %34 = arith.cmpi sge, %22, %33 : vector<64x128xi32>
    %35 = arith.extui %34 : vector<64x128xi1> to vector<64x128xi32>
    %36 = arith.addi %32, %35 : vector<64x128xi32>
    %c0_i32_8 = arith.constant 0 : i32
    %37 = vector.broadcast %c0_i32_8 : i32 to vector<64x128xi32>
    %c32_i32_9 = arith.constant 32 : i32
    %38 = vector.broadcast %c32_i32_9 : i32 to vector<64x128xi32>
    %39 = arith.cmpi sge, %23, %38 : vector<64x128xi32>
    %40 = arith.extui %39 : vector<64x128xi1> to vector<64x128xi32>
    %41 = arith.addi %37, %40 : vector<64x128xi32>
    %c64_i32 = arith.constant 64 : i32
    %42 = vector.broadcast %c64_i32 : i32 to vector<64x128xi32>
    %43 = arith.cmpi sge, %23, %42 : vector<64x128xi32>
    %44 = arith.extui %43 : vector<64x128xi1> to vector<64x128xi32>
    %45 = arith.addi %41, %44 : vector<64x128xi32>
    %c96_i32 = arith.constant 96 : i32
    %46 = vector.broadcast %c96_i32 : i32 to vector<64x128xi32>
    %47 = arith.cmpi sge, %23, %46 : vector<64x128xi32>
    %48 = arith.extui %47 : vector<64x128xi1> to vector<64x128xi32>
    %49 = arith.addi %45, %48 : vector<64x128xi32>
    %50 = arith.cmpi eq, %36, %49 : vector<64x128xi32>
    %51 = arith.extui %50 : vector<64x128xi1> to vector<64x128xi32>
    %52 = arith.sitofp %51 : vector<64x128xi32> to vector<64x128xf32>
    %53 = vector.extract_strided_slice %2 {offsets = [0, 0], sizes = [16, 128], strides = [1, 1]} : vector<32x384xf32> to vector<16x128xf32>
    %54 = vector.extract_strided_slice %2 {offsets = [0, 128], sizes = [16, 128], strides = [1, 1]} : vector<32x384xf32> to vector<16x128xf32>
    %55 = vector.extract_strided_slice %2 {offsets = [0, 256], sizes = [16, 128], strides = [1, 1]} : vector<32x384xf32> to vector<16x128xf32>
    %56 = tpu.concatenate %54, %54, %54, %54 in 0 : vector<16x128xf32>, vector<16x128xf32>, vector<16x128xf32>, vector<16x128xf32> -> vector<64x128xf32>
    %57 = arith.mulf %56, %52 : vector<64x128xf32>
    %58 = tpu.concatenate %55, %55, %55, %55 in 0 : vector<16x128xf32>, vector<16x128xf32>, vector<16x128xf32>, vector<16x128xf32> -> vector<64x128xf32>
    %59 = arith.mulf %58, %52 : vector<64x128xf32>
    %cst_10 = arith.constant dense<0.000000e+00> : vector<16x64xf32>
    %60 = tpu.matmul %53, %57, %cst_10 {dimension_numbers = #tpu.dot_dimension_numbers<[1], [1], [0], [0], [0, 0, 1, 0], [], []>} : vector<16x128xf32>, vector<64x128xf32>, vector<16x64xf32> -> vector<16x64xf32>
    %cst_11 = arith.constant 0xFF800000 : f32
    %61 = vector.broadcast %cst_11 : f32 to vector<16x64xf32>
    %62 = arith.select %21, %60, %61 : vector<16x64xi1>, vector<16x64xf32>
    %cst_12 = arith.constant dense<0xFF800000> : vector<16xf32>
    %63 = vector.multi_reduction <maximumf>, %62, %cst_12 [1] : vector<16x64xf32> to vector<16xf32>
    %64 = vector.shape_cast %63 : vector<16xf32> to vector<16x1xf32>
    %65 = vector.broadcast %64 : vector<16x1xf32> to vector<16x64xf32>
    %66 = arith.subf %62, %65 : vector<16x64xf32>
    %67 = math.exp %66 : vector<16x64xf32>
    %cst_13 = arith.constant dense<0.000000e+00> : vector<16x128xf32>
    %68 = tpu.matmul %67, %59, %cst_13 {dimension_numbers = #tpu.dot_dimension_numbers<[1], [0], [0], [1], [0, 0, 1, 1], [], []>} : vector<16x64xf32>, vector<64x128xf32>, vector<16x128xf32> -> vector<16x128xf32>
    %cst_14 = arith.constant dense<0.000000e+00> : vector<16x128xf32>
    %69 = tpu.matmul %67, %52, %cst_14 {dimension_numbers = #tpu.dot_dimension_numbers<[1], [0], [0], [1], [0, 0, 1, 1], [], []>} : vector<16x64xf32>, vector<64x128xf32>, vector<16x128xf32> -> vector<16x128xf32>
    %70 = tpu.reciprocal %69 : vector<16x128xf32> -> vector<16x128xf32>
    %71 = arith.mulf %68, %70 : vector<16x128xf32>
    %72 = vector.extract_strided_slice %2 {offsets = [16, 0], sizes = [16, 128], strides = [1, 1]} : vector<32x384xf32> to vector<16x128xf32>
    %73 = vector.extract_strided_slice %2 {offsets = [16, 128], sizes = [16, 128], strides = [1, 1]} : vector<32x384xf32> to vector<16x128xf32>
    %74 = vector.extract_strided_slice %2 {offsets = [16, 256], sizes = [16, 128], strides = [1, 1]} : vector<32x384xf32> to vector<16x128xf32>
    %75 = tpu.concatenate %73, %73, %73, %73 in 0 : vector<16x128xf32>, vector<16x128xf32>, vector<16x128xf32>, vector<16x128xf32> -> vector<64x128xf32>
    %76 = arith.mulf %75, %52 : vector<64x128xf32>
    %77 = tpu.concatenate %74, %74, %74, %74 in 0 : vector<16x128xf32>, vector<16x128xf32>, vector<16x128xf32>, vector<16x128xf32> -> vector<64x128xf32>
    %78 = arith.mulf %77, %52 : vector<64x128xf32>
    %cst_15 = arith.constant dense<0.000000e+00> : vector<16x64xf32>
    %79 = tpu.matmul %72, %76, %cst_15 {dimension_numbers = #tpu.dot_dimension_numbers<[1], [1], [0], [0], [0, 0, 1, 0], [], []>} : vector<16x128xf32>, vector<64x128xf32>, vector<16x64xf32> -> vector<16x64xf32>
    %cst_16 = arith.constant 0xFF800000 : f32
    %80 = vector.broadcast %cst_16 : f32 to vector<16x64xf32>
    %81 = arith.select %21, %79, %80 : vector<16x64xi1>, vector<16x64xf32>
    %cst_17 = arith.constant dense<0xFF800000> : vector<16xf32>
    %82 = vector.multi_reduction <maximumf>, %81, %cst_17 [1] : vector<16x64xf32> to vector<16xf32>
    %83 = vector.shape_cast %82 : vector<16xf32> to vector<16x1xf32>
    %84 = vector.broadcast %83 : vector<16x1xf32> to vector<16x64xf32>
    %85 = arith.subf %81, %84 : vector<16x64xf32>
    %86 = math.exp %85 : vector<16x64xf32>
    %cst_18 = arith.constant dense<0.000000e+00> : vector<16x128xf32>
    %87 = tpu.matmul %86, %78, %cst_18 {dimension_numbers = #tpu.dot_dimension_numbers<[1], [0], [0], [1], [0, 0, 1, 1], [], []>} : vector<16x64xf32>, vector<64x128xf32>, vector<16x128xf32> -> vector<16x128xf32>
    %cst_19 = arith.constant dense<0.000000e+00> : vector<16x128xf32>
    %88 = tpu.matmul %86, %52, %cst_19 {dimension_numbers = #tpu.dot_dimension_numbers<[1], [0], [0], [1], [0, 0, 1, 1], [], []>} : vector<16x64xf32>, vector<64x128xf32>, vector<16x128xf32> -> vector<16x128xf32>
    %89 = tpu.reciprocal %88 : vector<16x128xf32> -> vector<16x128xf32>
    %90 = arith.mulf %87, %89 : vector<16x128xf32>
    %91 = tpu.concatenate %71, %90 in 0 : vector<16x128xf32>, vector<16x128xf32> -> vector<32x128xf32>
    %c0_20 = arith.constant 0 : index
    %c0_21 = arith.constant 0 : index
    %92 = vector.load %arg3[%c0_20, %c0_21] : memref<128x192xf32, #tpu.memory_space<vmem>>, vector<128x192xf32>
    %cst_22 = arith.constant dense<0.000000e+00> : vector<32x192xf32>
    %93 = tpu.matmul %91, %92, %cst_22 {dimension_numbers = #tpu.dot_dimension_numbers<[1], [0], [0], [1], [0, 0, 1, 1], [], []>} : vector<32x128xf32>, vector<128x192xf32>, vector<32x192xf32> -> vector<32x192xf32>
    %c0_23 = arith.constant 0 : index
    %c0_24 = arith.constant 0 : index
    %94 = vector.load %arg4[%c0_23, %c0_24] : memref<1x192xf32, #tpu.memory_space<vmem>>, vector<1x192xf32>
    %95 = vector.broadcast %94 : vector<1x192xf32> to vector<32x192xf32>
    %96 = arith.addf %93, %95 : vector<32x192xf32>
    %c0_25 = arith.constant 0 : index
    %c0_26 = arith.constant 0 : index
    %97 = vector.load %arg5[%c0_25, %c0_26] : memref<32x192xf32, #tpu.memory_space<vmem>>, vector<32x192xf32>
    tpu.vector_store %arg5[%c0_25, %c0_26], %96 {strides = array<i32>} : memref<32x192xf32, #tpu.memory_space<vmem>>, vector<32x192xf32>,
    return
  }
  func.func @transform_0(%arg0: i32) -> (i32, i32) {
    %c0_i32 = arith.constant 0 : i32
    %c0_i32_0 = arith.constant 0 : i32
    return %arg0, %c0_i32 : i32, i32
  }
  func.func @transform_1(%arg0: i32) -> (i32, i32) {
    %c0_i32 = arith.constant 0 : i32
    %c0_i32_0 = arith.constant 0 : i32
    %c0_i32_1 = arith.constant 0 : i32
    return %c0_i32, %c0_i32_0 : i32, i32
  }
  func.func @transform_2(%arg0: i32) -> (i32, i32) {
    %c0_i32 = arith.constant 0 : i32
    %c0_i32_0 = arith.constant 0 : i32
    %c0_i32_1 = arith.constant 0 : i32
    return %c0_i32, %c0_i32_0 : i32, i32
  }
  func.func @transform_3(%arg0: i32) -> (i32, i32) {
    %c0_i32 = arith.constant 0 : i32
    %c0_i32_0 = arith.constant 0 : i32
    %c0_i32_1 = arith.constant 0 : i32
    return %c0_i32, %c0_i32_0 : i32, i32
  }
  func.func @transform_4(%arg0: i32) -> (i32, i32) {
    %c0_i32 = arith.constant 0 : i32
    %c0_i32_0 = arith.constant 0 : i32
    return %arg0, %c0_i32 : i32, i32
  }
}

</mosaic_0001>

<llo_original>
// kernel: multi_head_attention.1
$region0: #{multi_head_attention.1}
  #allocation0 [shape = 'u32[]', space=smem, size = 0x4, offset = 0x4, fixed_abs, tag = 'smem constant byte address 0x4 - core index']
  #allocation1 [shape = 'u32[144,128]{1,0:T(1,128)}', space=vmem, size = 0x12000, scoped, tag = 'internal scratch']
  %s0 = inlined_call_operand.vmem [shape: f32[32,192], index: 0, kind: input, shape index: {}]
  %s1 = inlined_call_operand.hbm [shape: f32[192,384], index: 1, kind: input, shape index: {}]
  %s2 = inlined_call_operand.vmem [shape: f32[128,192], index: 2, kind: input, shape index: {}]
  %s3 = inlined_call_operand.vmem [shape: f32[1,192], index: 3, kind: input, shape index: {}]
  %s4 = inlined_call_operand.hbm [shape: f32[32,192], index: 4, kind: output, shape index: {}]
  %s5 = sld [smem:[#allocation0]]
  $region30: #{multi_head_attention.1} parent=0
    _
  %s7 = ssub.s32 1, %s5
  %s8 = scalar_select 0, %s7, %s5
  $region1: #{multi_head_attention.1} parent=0
    #allocation2 [shape = 'u8[294912]{0}', space=vmem, size = 0x48000, scoped, tag = 'input window, operand 1, single buffered']
    #allocation3 [shape = 's32[1]{0}', space=sflag, size = 0x4, scoped, tag = 'scoped memory for multi_head_attention.1']
    #allocation4 [shape = 's32[1]{0}', space=sflag, size = 0x4, scoped, tag = 'scoped memory for multi_head_attention.1']
    #allocation5 [shape = 'u8[32768]{0}', space=vmem, size = 0x8000, scoped, tag = 'output window, operand 0, single buffered']
    %9 = vsyncpa [#allocation3], 0
    %10 = vsyncpa [#allocation4], 0
    // Predicated region
    $region2: #{multi_head_attention.1} parent=1 // pred_check
      _
    $region3: #{multi_head_attention.1} parent=1 // pred_check_branch
      %12 = sbr.rel (0) target = $region5
    $region4: #{multi_head_attention.1} parent=1 // pred_region
      _
    $region5: #{multi_head_attention.1} parent=1 // pred_fallthru
      _
    // Predicated region
    $region6: #{multi_head_attention.1} parent=1 // pred_check
      _
    $region7: #{multi_head_attention.1} parent=1 // pred_check_branch
      %14 = sbr.rel (0) target = $region9
    $region8: #{multi_head_attention.1} parent=1 // pred_region
      %s16 = ssub.s32 9216, 9216
      %17 = vsyncadd [#allocation3], %s16
      %s18 = sshll.u32 [#allocation2], 4
      %s19 = int_to_ptr.vmem [resolvable:$true] %s18
      %24 = dma.hbm_to_vmem [thread:$0]  %s1, 9216, %s19, [#allocation3], 384, 384, 24
    $region9: #{multi_head_attention.1} parent=1 // pred_fallthru
      _
    // Predicated region
    $region10: #{multi_head_attention.1} parent=1 // pred_check
      _
    $region11: #{multi_head_attention.1} parent=1 // pred_check_branch
      %26 = sbr.rel (0) target = $region13
    $region12: #{multi_head_attention.1} parent=1 // pred_region
      _
    $region13: #{multi_head_attention.1} parent=1 // pred_fallthru
      _
    // Predicated region
    $region14: #{multi_head_attention.1} parent=1 // pred_check
      _
    $region15: #{multi_head_attention.1} parent=1 // pred_check_branch
      %28 = sbr.rel (0) target = $region17
    $region16: #{multi_head_attention.1} parent=1 // pred_region
      _
    $region17: #{multi_head_attention.1} parent=1 // pred_fallthru
      _
    // Predicated region
    $region18: #{multi_head_attention.1} parent=1 // pred_check
      _
    $region19: #{multi_head_attention.1} parent=1 // pred_check_branch
      %30 = sbr.rel (0) target = $region21
    $region20: #{multi_head_attention.1} parent=1 // pred_region
      %31 = dma.done [#allocation3], 9216
    $region21: #{multi_head_attention.1} parent=1 // pred_fallthru
      _
    %v32 = vld [vmem:[%s0] sm:$0xff]
    %v33 = vld [vmem:[%s0 + $0x8] sm:$0xff]
    %v34 = vld [vmem:[%s0 + $0x10] sm:$0xff]
    %v35 = vld [vmem:[%s0 + $0x18] sm:$0xff]
    %v36 = vld [vmem:[%s0 + $0x20] sm:$0xff]
    %v37 = vld [vmem:[%s0 + $0x28] sm:$0xff]
    %v38 = vld [vmem:[%s0 + $0x30] sm:$0xff]
    %v39 = vld [vmem:[%s0 + $0x38] sm:$0xff]
    %v40 = vld [vmem:[#allocation2] sm:$0xff]
    %v41 = vld [vmem:[#allocation2 + $0x8] sm:$0xff]
    %v42 = vld [vmem:[#allocation2 + $0x10] sm:$0xff]
    %v43 = vld [vmem:[#allocation2 + $0x18] sm:$0xff]
    %v44 = vld [vmem:[#allocation2 + $0x20] sm:$0xff]
    %v45 = vld [vmem:[#allocation2 + $0x28] sm:$0xff]
    %v46 = vld [vmem:[#allocation2 + $0x30] sm:$0xff]
    %v47 = vld [vmem:[#allocation2 + $0x38] sm:$0xff]
    %v48 = vld [vmem:[#allocation2 + $0x40] sm:$0xff]
    %v49 = vld [vmem:[#allocation2 + $0x48] sm:$0xff]
    %v50 = vld [vmem:[#allocation2 + $0x50] sm:$0xff]
    %v51 = vld [vmem:[#allocation2 + $0x58] sm:$0xff]
    %v52 = vld [vmem:[#allocation2 + $0x60] sm:$0xff]
    %v53 = vld [vmem:[#allocation2 + $0x68] sm:$0xff]
    %v54 = vld [vmem:[#allocation2 + $0x70] sm:$0xff]
    %v55 = vld [vmem:[#allocation2 + $0x78] sm:$0xff]
    %v56 = vld [vmem:[#allocation2 + $0x80] sm:$0xff]
    %v57 = vld [vmem:[#allocation2 + $0x88] sm:$0xff]
    %v58 = vld [vmem:[#allocation2 + $0x90] sm:$0xff]
    %v59 = vld [vmem:[#allocation2 + $0x98] sm:$0xff]
    %v60 = vld [vmem:[#allocation2 + $0xa0] sm:$0xff]
    %v61 = vld [vmem:[#allocation2 + $0xa8] sm:$0xff]
    %v62 = vld [vmem:[#allocation2 + $0xb0] sm:$0xff]
    %v63 = vld [vmem:[#allocation2 + $0xb8] sm:$0xff]
    %v64 = vld [vmem:[#allocation2 + $0xc0] sm:$0xff]
    %v65 = vld [vmem:[#allocation2 + $0xc8] sm:$0xff]
    %v66 = vld [vmem:[#allocation2 + $0xd0] sm:$0xff]
    %v67 = vld [vmem:[#allocation2 + $0xd8] sm:$0xff]
    %v68 = vld [vmem:[#allocation2 + $0xe0] sm:$0xff]
    %v69 = vld [vmem:[#allocation2 + $0xe8] sm:$0xff]
    %v70 = vld [vmem:[#allocation2 + $0xf0] sm:$0xff]
    %v71 = vld [vmem:[#allocation2 + $0xf8] sm:$0xff]
    %v72 = vld [vmem:[#allocation2 + $0x100] sm:$0xff]
    %v73 = vld [vmem:[#allocation2 + $0x108] sm:$0xff]
    %v74 = vld [vmem:[#allocation2 + $0x110] sm:$0xff]
    %v75 = vld [vmem:[#allocation2 + $0x118] sm:$0xff]
    %v76 = vld [vmem:[#allocation2 + $0x120] sm:$0xff]
    %v77 = vld [vmem:[#allocation2 + $0x128] sm:$0xff]
    %v78 = vld [vmem:[#allocation2 + $0x130] sm:$0xff]
    %v79 = vld [vmem:[#allocation2 + $0x138] sm:$0xff]
    %v80 = vld [vmem:[#allocation2 + $0x140] sm:$0xff]
    %v81 = vld [vmem:[#allocation2 + $0x148] sm:$0xff]
    %v82 = vld [vmem:[#allocation2 + $0x150] sm:$0xff]
    %v83 = vld [vmem:[#allocation2 + $0x158] sm:$0xff]
    %v84 = vld [vmem:[#allocation2 + $0x160] sm:$0xff]
    %v85 = vld [vmem:[#allocation2 + $0x168] sm:$0xff]
    %v86 = vld [vmem:[#allocation2 + $0x170] sm:$0xff]
    %v87 = vld [vmem:[#allocation2 + $0x178] sm:$0xff]
    %v88 = vld [vmem:[#allocation2 + $0x180] sm:$0xff]
    %v89 = vld [vmem:[#allocation2 + $0x188] sm:$0xff]
    %v90 = vld [vmem:[#allocation2 + $0x190] sm:$0xff]
    %v91 = vld [vmem:[#allocation2 + $0x198] sm:$0xff]
    %v92 = vld [vmem:[#allocation2 + $0x1a0] sm:$0xff]
    %v93 = vld [vmem:[#allocation2 + $0x1a8] sm:$0xff]
    %v94 = vld [vmem:[#allocation2 + $0x1b0] sm:$0xff]
    %v95 = vld [vmem:[#allocation2 + $0x1b8] sm:$0xff]
    %v96 = vld [vmem:[#allocation2 + $0x1c0] sm:$0xff]
    %v97 = vld [vmem:[#allocation2 + $0x1c8] sm:$0xff]
    %v98 = vld [vmem:[#allocation2 + $0x1d0] sm:$0xff]
    %v99 = vld [vmem:[#allocation2 + $0x1d8] sm:$0xff]
    %v100 = vld [vmem:[#allocation2 + $0x1e0] sm:$0xff]
    %v101 = vld [vmem:[#allocation2 + $0x1e8] sm:$0xff]
    %v102 = vld [vmem:[#allocation2 + $0x1f0] sm:$0xff]
    %v103 = vld [vmem:[#allocation2 + $0x1f8] sm:$0xff]
    %v104 = vld [vmem:[#allocation2 + $0x200] sm:$0xff]
    %v105 = vld [vmem:[#allocation2 + $0x208] sm:$0xff]
    %v106 = vld [vmem:[#allocation2 + $0x210] sm:$0xff]
    %v107 = vld [vmem:[#allocation2 + $0x218] sm:$0xff]
    %v108 = vld [vmem:[#allocation2 + $0x220] sm:$0xff]
    %v109 = vld [vmem:[#allocation2 + $0x228] sm:$0xff]
    %v110 = vld [vmem:[#allocation2 + $0x230] sm:$0xff]
    %v111 = vld [vmem:[#allocation2 + $0x238] sm:$0xff]
    %vm112 = vcmask 523264
    %v114 = vsel %vm112, %v33, 0
    %v117 = vsel %vm112, %v35, 0
    %v120 = vsel %vm112, %v37, 0
    %v123 = vsel %vm112, %v39, 0
    %125 = vmatprep.subr.mxu0 %v41
    %126 = vmatpush1.msra.mxu0 %v40
    %127 = vmatprep.subr.mxu0 %v44
    %128 = vmatpush1.msra.mxu0 %v43
    %129 = vmatprep.subr.mxu0 %v47
    %130 = vmatpush1.msra.mxu0 %v46
    %131 = vmatprep.subr.mxu0 %v50
    %132 = vmatpush1.msra.mxu0 %v49
    %133 = vmatprep.subr.mxu0 %v53
    %134 = vmatpush1.msra.mxu0 %v52
    %135 = vmatprep.subr.mxu0 %v56
    %136 = vmatpush1.msra.mxu0 %v55
    %137 = vmatprep.subr.mxu0 %v59
    %138 = vmatpush1.msra.mxu0 %v58
    %139 = vmatprep.subr.mxu0 %v62
    %140 = vmatpush1.msra.mxu0 %v61
    %141 = vmatprep.subr.mxu0 %v65
    %142 = vmatpush1.msra.mxu0 %v64
    %143 = vmatprep.subr.mxu0 %v68
    %144 = vmatpush1.msra.mxu0 %v67
    %145 = vmatprep.subr.mxu0 %v71
    %146 = vmatpush1.msra.mxu0 %v70
    %147 = vmatprep.subr.mxu0 %v74
    %148 = vmatpush1.msra.mxu0 %v73
    %149 = vmatprep.subr.mxu0 %v77
    %150 = vmatpush1.msra.mxu0 %v76
    %151 = vmatprep.subr.mxu0 %v80
    %152 = vmatpush1.msra.mxu0 %v79
    %153 = vmatprep.subr.mxu0 %v83
    %154 = vmatpush1.msra.mxu0 %v82
    %155 = vmatprep.subr.mxu0 %v86
    %156 = vmatpush1.msra.mxu0 %v85
    %157 = vmatprep.subr.mxu0 %v89
    %158 = vmatpush1.msra.mxu0 %v88
    %159 = vmatprep.subr.mxu0 %v92
    %160 = vmatpush1.msra.mxu0 %v91
    %161 = vmatprep.subr.mxu0 %v95
    %162 = vmatpush1.msra.mxu0 %v94
    %163 = vmatprep.subr.mxu0 %v98
    %164 = vmatpush1.msra.mxu0 %v97
    %165 = vmatprep.subr.mxu0 %v101
    %166 = vmatpush1.msra.mxu0 %v100
    %167 = vmatprep.subr.mxu0 %v104
    %168 = vmatpush1.msra.mxu0 %v103
    %169 = vmatprep.subr.mxu0 %v107
    %170 = vmatpush1.msra.mxu0 %v106
    %171 = vmatprep.subr.mxu0 %v110
    %172 = vmatpush1.msra.mxu0 %v109
    %173 = vmatprep.subr.mxu0 0.0
    %174 = vmatpush1.msra.mxu0 0.0
    %175 = vmatprep.subr.mxu0 0.0
    %176 = vmatpush1.msra.mxu0 0.0
    %177 = vmatprep.subr.mxu0 0.0
    %178 = vmatpush1.msra.mxu0 0.0
    %179 = vmatprep.subr.mxu0 0.0
    %180 = vmatpush1.msra.mxu0 0.0
    %181 = vmatprep.subr.mxu0 0.0
    %182 = vmatpush1.msra.mxu0 0.0
    %183 = vmatprep.subr.mxu0 0.0
    %184 = vmatpush1.msra.mxu0 0.0
    %185 = vmatprep.subr.mxu0 0.0
    %186 = vmatpush1.msra.mxu0 0.0
    %187 = vmatprep.subr.mxu0 0.0
    %188 = vmatpush1.msra.mxu0 0.0
    %189 = vmatprep.mubr.f32.mxu0 %v114
    %190 = vmatmul.mubr.f32.gmra.mrb[0].mxu0 %v32
    %v191 = vpop.f32.mrb[0].mxu0
    %v192 = vadd.f32 0.0, %v191
    %v193 = vpop.f32.mrb[0].mxu0
    %v194 = vadd.f32 0.0, %v193
    %195 = vmatprep.mubr.f32.mxu0 %v117
    %196 = vmatmul.mubr.f32.gmra.mrb[0].mxu0 %v34
    %v197 = vpop.f32.mrb[0].mxu0
    %v198 = vadd.f32 0.0, %v197
    %v199 = vpop.f32.mrb[0].mxu0
    %v200 = vadd.f32 0.0, %v199
    %201 = vmatprep.mubr.f32.mxu0 %v120
    %202 = vmatmul.mubr.f32.gmra.mrb[0].mxu0 %v36
    %v203 = vpop.f32.mrb[0].mxu0
    %v204 = vadd.f32 0.0, %v203
    %v205 = vpop.f32.mrb[0].mxu0
    %v206 = vadd.f32 0.0, %v205
    %207 = vmatprep.mubr.f32.mxu0 %v123
    %208 = vmatmul.mubr.f32.gmra.mrb[0].mxu0 %v38
    %v209 = vpop.f32.mrb[0].mxu0
    %v210 = vadd.f32 0.0, %v209
    %v211 = vpop.f32.mrb[0].mxu0
    %v212 = vadd.f32 0.0, %v211
    %213 = vdwg.mxu0
    %214 = vmatprep.subr.mxu0 0.0
    %215 = vmatpush1.msra.mxu0 %v42
    %216 = vmatprep.subr.mxu0 0.0
    %217 = vmatpush1.msra.mxu0 %v45
    %218 = vmatprep.subr.mxu0 0.0
    %219 = vmatpush1.msra.mxu0 %v48
    %220 = vmatprep.subr.mxu0 0.0
    %221 = vmatpush1.msra.mxu0 %v51
    %222 = vmatprep.subr.mxu0 0.0
    %223 = vmatpush1.msra.mxu0 %v54
    %224 = vmatprep.subr.mxu0 0.0
    %225 = vmatpush1.msra.mxu0 %v57
    %226 = vmatprep.subr.mxu0 0.0
    %227 = vmatpush1.msra.mxu0 %v60
    %228 = vmatprep.subr.mxu0 0.0
    %229 = vmatpush1.msra.mxu0 %v63
    %230 = vmatprep.subr.mxu0 0.0
    %231 = vmatpush1.msra.mxu0 %v66
    %232 = vmatprep.subr.mxu0 0.0
    %233 = vmatpush1.msra.mxu0 %v69
    %234 = vmatprep.subr.mxu0 0.0
    %235 = vmatpush1.msra.mxu0 %v72
    %236 = vmatprep.subr.mxu0 0.0
    %237 = vmatpush1.msra.mxu0 %v75
    %238 = vmatprep.subr.mxu0 0.0
    %239 = vmatpush1.msra.mxu0 %v78
    %240 = vmatprep.subr.mxu0 0.0
    %241 = vmatpush1.msra.mxu0 %v81
    %242 = vmatprep.subr.mxu0 0.0
    %243 = vmatpush1.msra.mxu0 %v84
    %244 = vmatprep.subr.mxu0 0.0
    %245 = vmatpush1.msra.mxu0 %v87
    %246 = vmatprep.subr.mxu0 0.0
    %247 = vmatpush1.msra.mxu0 %v90
    %248 = vmatprep.subr.mxu0 0.0
    %249 = vmatpush1.msra.mxu0 %v93
    %250 = vmatprep.subr.mxu0 0.0
    %251 = vmatpush1.msra.mxu0 %v96
    %252 = vmatprep.subr.mxu0 0.0
    %253 = vmatpush1.msra.mxu0 %v99
    %254 = vmatprep.subr.mxu0 0.0
    %255 = vmatpush1.msra.mxu0 %v102
    %256 = vmatprep.subr.mxu0 0.0
    %257 = vmatpush1.msra.mxu0 %v105
    %258 = vmatprep.subr.mxu0 0.0
    %259 = vmatpush1.msra.mxu0 %v108
    %260 = vmatprep.subr.mxu0 0.0
    %261 = vmatpush1.msra.mxu0 %v111
    %262 = vmatprep.subr.mxu0 0.0
    %263 = vmatpush1.msra.mxu0 0.0
    %264 = vmatprep.subr.mxu0 0.0
    %265 = vmatpush1.msra.mxu0 0.0
    %266 = vmatprep.subr.mxu0 0.0
    %267 = vmatpush1.msra.mxu0 0.0
    %268 = vmatprep.subr.mxu0 0.0
    %269 = vmatpush1.msra.mxu0 0.0
    %270 = vmatprep.subr.mxu0 0.0
    %271 = vmatpush1.msra.mxu0 0.0
    %272 = vmatprep.subr.mxu0 0.0
    %273 = vmatpush1.msra.mxu0 0.0
    %274 = vmatprep.subr.mxu0 0.0
    %275 = vmatpush1.msra.mxu0 0.0
    %276 = vmatprep.subr.mxu0 0.0
    %277 = vmatpush1.msra.mxu0 0.0
    %278 = vmatprep.mubr.f32.mxu0 %v114
    %279 = vmatmul.mubr.f32.gmra.mrb[0].mxu0 %v32
    %v280 = vpop.f32.mrb[0].mxu0
    %v281 = vadd.f32 0.0, %v280
    %v282 = vpop.f32.mrb[0].mxu0
    %283 = vmatprep.mubr.f32.mxu0 %v117
    %284 = vmatmul.mubr.f32.gmra.mrb[0].mxu0 %v34
    %v285 = vpop.f32.mrb[0].mxu0
    %v286 = vadd.f32 0.0, %v285
    %v287 = vpop.f32.mrb[0].mxu0
    %288 = vmatprep.mubr.f32.mxu0 %v120
    %289 = vmatmul.mubr.f32.gmra.mrb[0].mxu0 %v36
    %v290 = vpop.f32.mrb[0].mxu0
    %v291 = vadd.f32 0.0, %v290
    %v292 = vpop.f32.mrb[0].mxu0
    %293 = vmatprep.mubr.f32.mxu0 %v123
    %294 = vmatmul.mubr.f32.gmra.mrb[0].mxu0 %v38
    %v295 = vpop.f32.mrb[0].mxu0
    %v296 = vadd.f32 0.0, %v295
    %v297 = vpop.f32.mrb[0].mxu0
    %298 = vdwg.mxu0
    %v299 = vlaneseq
    %v300 = vand.u32 %v299, 127
    %v301 = vlaneseq
    %v302 = vshrl.u32 %v301, 7
    %v303 = vadd.s32 %v302, 8
    %vm304 = vcmp.ge.s32.totalorder %v300, 16
    %v305 = vsel %vm304, 1, 0
    %vm306 = vcmp.ge.s32.totalorder %v300, 32
    %v307 = vsel %vm306, 1, 0
    %v308 = vadd.s32 %v305, %v307
    %vm309 = vcmp.ge.s32.totalorder %v300, 48
    %v310 = vsel %vm309, 1, 0
    %v311 = vadd.s32 %v308, %v310
    %v312 = vmul.u32 %v311, 16
    %v313 = vsub.s32 %v300, %v312
    %vm314 = vcmp.le.s32.totalorder %v313, %v302
    %vm315 = vcmp.le.s32.totalorder %v313, %v303
    %v316 = vadd.s32 %v302, 16
    %v317 = vadd.s32 %v302, 24
    %v318 = vadd.s32 %v302, 32
    %v319 = vadd.s32 %v302, 40
    %v320 = vadd.s32 %v302, 48
    %v321 = vadd.s32 %v302, 56
    %vm322 = vcmp.ge.s32.totalorder %v302, 16
    %vm323 = vcmp.ge.s32.totalorder %v303, 16
    %vm324 = vcmp.ge.s32.totalorder %v316, 16
    %vm325 = vcmp.ge.s32.totalorder %v317, 16
    %vm326 = vcmp.ge.s32.totalorder %v318, 16
    %vm327 = vcmp.ge.s32.totalorder %v319, 16
    %vm328 = vcmp.ge.s32.totalorder %v320, 16
    %vm329 = vcmp.ge.s32.totalorder %v321, 16
    %v330 = vsel %vm322, 1, 0
    %v331 = vsel %vm323, 1, 0
    %v332 = vsel %vm324, 1, 0
    %v333 = vsel %vm325, 1, 0
    %v334 = vsel %vm326, 1, 0
    %v335 = vsel %vm327, 1, 0
    %v336 = vsel %vm328, 1, 0
    %v337 = vsel %vm329, 1, 0
    %vm338 = vcmp.ge.s32.totalorder %v302, 32
    %vm339 = vcmp.ge.s32.totalorder %v303, 32
    %vm340 = vcmp.ge.s32.totalorder %v316, 32
    %vm341 = vcmp.ge.s32.totalorder %v317, 32
    %vm342 = vcmp.ge.s32.totalorder %v318, 32
    %vm343 = vcmp.ge.s32.totalorder %v319, 32
    %vm344 = vcmp.ge.s32.totalorder %v320, 32
    %vm345 = vcmp.ge.s32.totalorder %v321, 32
    %v346 = vsel %vm338, 1, 0
    %v347 = vsel %vm339, 1, 0
    %v348 = vsel %vm340, 1, 0
    %v349 = vsel %vm341, 1, 0
    %v350 = vsel %vm342, 1, 0
    %v351 = vsel %vm343, 1, 0
    %v352 = vsel %vm344, 1, 0
    %v353 = vsel %vm345, 1, 0
    %v354 = vadd.s32 %v330, %v346
    %v355 = vadd.s32 %v331, %v347
    %v356 = vadd.s32 %v332, %v348
    %v357 = vadd.s32 %v333, %v349
    %v358 = vadd.s32 %v334, %v350
    %v359 = vadd.s32 %v335, %v351
    %v360 = vadd.s32 %v336, %v352
    %v361 = vadd.s32 %v337, %v353
    %vm362 = vcmp.ge.s32.totalorder %v302, 48
    %vm363 = vcmp.ge.s32.totalorder %v303, 48
    %vm364 = vcmp.ge.s32.totalorder %v316, 48
    %vm365 = vcmp.ge.s32.totalorder %v317, 48
    %vm366 = vcmp.ge.s32.totalorder %v318, 48
    %vm367 = vcmp.ge.s32.totalorder %v319, 48
    %vm368 = vcmp.ge.s32.totalorder %v320, 48
    %vm369 = vcmp.ge.s32.totalorder %v321, 48
    %v370 = vsel %vm362, 1, 0
    %v371 = vsel %vm363, 1, 0
    %v372 = vsel %vm364, 1, 0
    %v373 = vsel %vm365, 1, 0
    %v374 = vsel %vm366, 1, 0
    %v375 = vsel %vm367, 1, 0
    %v376 = vsel %vm368, 1, 0
    %v377 = vsel %vm369, 1, 0
    %v378 = vadd.s32 %v354, %v370
    %v379 = vadd.s32 %v355, %v371
    %v380 = vadd.s32 %v356, %v372
    %v381 = vadd.s32 %v357, %v373
    %v382 = vadd.s32 %v358, %v374
    %v383 = vadd.s32 %v359, %v375
    %v384 = vadd.s32 %v360, %v376
    %v385 = vadd.s32 %v361, %v377
    %vm386 = vcmp.ge.s32.totalorder %v300, 64
    %v387 = vsel %vm386, 1, 0
    %v388 = vadd.s32 %v307, %v387
    %vm389 = vcmp.ge.s32.totalorder %v300, 96
    %v390 = vsel %vm389, 1, 0
    %v391 = vadd.s32 %v388, %v390
    %vm392 = vcmp.eq.s32.totalorder %v378, %v391
    %vm393 = vcmp.eq.s32.totalorder %v379, %v391
    %vm394 = vcmp.eq.s32.totalorder %v380, %v391
    %vm395 = vcmp.eq.s32.totalorder %v381, %v391
    %vm396 = vcmp.eq.s32.totalorder %v382, %v391
    %vm397 = vcmp.eq.s32.totalorder %v383, %v391
    %vm398 = vcmp.eq.s32.totalorder %v384, %v391
    %vm399 = vcmp.eq.s32.totalorder %v385, %v391
    %v400 = vsel %vm392, 1, 0
    %v401 = vsel %vm393, 1, 0
    %v402 = vsel %vm394, 1, 0
    %v403 = vsel %vm395, 1, 0
    %v404 = vsel %vm396, 1, 0
    %v405 = vsel %vm397, 1, 0
    %v406 = vsel %vm398, 1, 0
    %v407 = vsel %vm399, 1, 0
    %v408 = vcvt.s32.f32 %v400
    %v409 = vcvt.s32.f32 %v401
    %v410 = vcvt.s32.f32 %v402
    %v411 = vcvt.s32.f32 %v403
    %v412 = vcvt.s32.f32 %v404
    %v413 = vcvt.s32.f32 %v405
    %v414 = vcvt.s32.f32 %v406
    %v415 = vcvt.s32.f32 %v407
    %v416 = vmul.f32 %v194, %v408
    %v417 = vmul.f32 %v200, %v409
    %v418 = vmul.f32 %v194, %v410
    %v419 = vmul.f32 %v200, %v411
    %v420 = vmul.f32 %v194, %v412
    %v421 = vmul.f32 %v200, %v413
    %v422 = vmul.f32 %v194, %v414
    %v423 = vmul.f32 %v200, %v415
    %v424 = vmul.f32 %v281, %v408
    %v425 = vmul.f32 %v286, %v409
    %v426 = vmul.f32 %v281, %v410
    %v427 = vmul.f32 %v286, %v411
    %v428 = vmul.f32 %v281, %v412
    %v429 = vmul.f32 %v286, %v413
    %v430 = vmul.f32 %v281, %v414
    %v431 = vmul.f32 %v286, %v415
    %432 = vmatprep.subr.mxu0 0.0
    %433 = vmatpush1.xpose.msra.mxu0 %v416
    %434 = vmatprep.subr.mxu0 0.0
    %435 = vmatpush1.xpose.msra.mxu0 %v417
    %436 = vmatprep.subr.mxu0 0.0
    %437 = vmatpush1.xpose.msra.mxu0 %v418
    %438 = vmatprep.subr.mxu0 0.0
    %439 = vmatpush1.xpose.msra.mxu0 %v419
    %440 = vmatprep.subr.mxu0 0.0
    %441 = vmatpush1.xpose.msra.mxu0 %v420
    %442 = vmatprep.subr.mxu0 0.0
    %443 = vmatpush1.xpose.msra.mxu0 %v421
    %444 = vmatprep.subr.mxu0 0.0
    %445 = vmatpush1.xpose.msra.mxu0 %v422
    %446 = vmatprep.subr.mxu0 0.0
    %447 = vmatpush1.xpose.msra.mxu0 %v423
    %448 = vmatprep.subr.mxu0 0.0
    %449 = vmatpush1.xpose.msra.mxu0 0.0
    %450 = vmatprep.subr.mxu0 0.0
    %451 = vmatpush1.xpose.msra.mxu0 0.0
    %452 = vmatprep.subr.mxu0 0.0
    %453 = vmatpush1.xpose.msra.mxu0 0.0
    %454 = vmatprep.subr.mxu0 0.0
    %455 = vmatpush1.xpose.msra.mxu0 0.0
    %456 = vmatprep.subr.mxu0 0.0
    %457 = vmatpush1.xpose.msra.mxu0 0.0
    %458 = vmatprep.subr.mxu0 0.0
    %459 = vmatpush1.xpose.msra.mxu0 0.0
    %460 = vmatprep.subr.mxu0 0.0
    %461 = vmatpush1.xpose.msra.mxu0 0.0
    %462 = vmatprep.subr.mxu0 0.0
    %463 = vmatpush1.xpose.msra.mxu0 0.0
    %464 = vmatprep.subr.mxu0 0.0
    %465 = vmatpush1.xpose.msra.mxu0 0.0
    %466 = vmatprep.subr.mxu0 0.0
    %467 = vmatpush1.xpose.msra.mxu0 0.0
    %468 = vmatprep.subr.mxu0 0.0
    %469 = vmatpush1.xpose.msra.mxu0 0.0
    %470 = vmatprep.subr.mxu0 0.0
    %471 = vmatpush1.xpose.msra.mxu0 0.0
    %472 = vmatprep.subr.mxu0 0.0
    %473 = vmatpush1.xpose.msra.mxu0 0.0
    %474 = vmatprep.subr.mxu0 0.0
    %475 = vmatpush1.xpose.msra.mxu0 0.0
    %476 = vmatprep.subr.mxu0 0.0
    %477 = vmatpush1.xpose.msra.mxu0 0.0
    %478 = vmatprep.subr.mxu0 0.0
    %479 = vmatpush1.xpose.msra.mxu0 0.0
    %480 = vmatprep.subr.mxu0 0.0
    %481 = vmatpush1.xpose.msra.mxu0 0.0
    %482 = vmatprep.subr.mxu0 0.0
    %483 = vmatpush1.xpose.msra.mxu0 0.0
    %484 = vmatprep.subr.mxu0 0.0
    %485 = vmatpush1.xpose.msra.mxu0 0.0
    %486 = vmatprep.subr.mxu0 0.0
    %487 = vmatpush1.xpose.msra.mxu0 0.0
    %488 = vmatprep.subr.mxu0 0.0
    %489 = vmatpush1.xpose.msra.mxu0 0.0
    %490 = vmatprep.subr.mxu0 0.0
    %491 = vmatpush1.xpose.msra.mxu0 0.0
    %492 = vmatprep.subr.mxu0 0.0
    %493 = vmatpush1.xpose.msra.mxu0 0.0
    %494 = vmatprep.subr.mxu0 0.0
    %495 = vmatpush1.xpose.msra.mxu0 0.0
    %496 = vmatprep.mubr.f32.mxu0 0.0
    %497 = vmatmul.mubr.f32.gmra.mrb[0].mxu0 %v192
    %v498 = vpop.f32.mrb[0].mxu0
    %v499 = vadd.f32 0.0, %v498
    %v500 = vpop.f32.mrb[0].mxu0
    %501 = vmatprep.mubr.f32.mxu0 0.0
    %502 = vmatmul.mubr.f32.gmra.mrb[0].mxu0 %v198
    %v503 = vpop.f32.mrb[0].mxu0
    %v504 = vadd.f32 0.0, %v503
    %v505 = vpop.f32.mrb[0].mxu0
    %506 = vdwg.mxu0
    %v507 = vsel %vm314, %v499, -inf
    %v508 = vsel %vm315, %v504, -inf
    %v509 = vsel %vm112, %v507, -inf
    %510 = vmax.xlane.f32.xlu0 %v509
    %v511 = vpop.xlane.xlu0 %510
    %v512 = vsel %vm112, %v508, -inf
    %513 = vmax.xlane.f32.xlu0 %v512
    %v514 = vpop.xlane.xlu0 %513
    %v515 = vsub.f32 %v507, %v511
    %v516 = vsub.f32 %v508, %v514
    %v517 = vmul.f32 %v515, 1.442695
    %v518 = vpow.pop %v517
    %v519 = vmul.f32 %v516, 1.442695
    %v520 = vpow.pop %v519
    %v522 = vsel %vm112, %v518, 0
    %v525 = vsel %vm112, %v520, 0
    %527 = vmatprep.subr.mxu0 0.0
    %528 = vmatpush1.msra.mxu0 %v424
    %529 = vmatprep.subr.mxu0 0.0
    %530 = vmatpush1.msra.mxu0 %v425
    %531 = vmatprep.subr.mxu0 0.0
    %532 = vmatpush1.msra.mxu0 %v426
    %533 = vmatprep.subr.mxu0 0.0
    %534 = vmatpush1.msra.mxu0 %v427
    %535 = vmatprep.subr.mxu0 0.0
    %536 = vmatpush1.msra.mxu0 %v428
    %537 = vmatprep.subr.mxu0 0.0
    %538 = vmatpush1.msra.mxu0 %v429
    %539 = vmatprep.subr.mxu0 0.0
    %540 = vmatpush1.msra.mxu0 %v430
    %541 = vmatprep.subr.mxu0 0.0
    %542 = vmatpush1.msra.mxu0 %v431
    %543 = vmatprep.subr.mxu0 0.0
    %544 = vmatpush1.msra.mxu0 0.0
    %545 = vmatprep.subr.mxu0 0.0
    %546 = vmatpush1.msra.mxu0 0.0
    %547 = vmatprep.subr.mxu0 0.0
    %548 = vmatpush1.msra.mxu0 0.0
    %549 = vmatprep.subr.mxu0 0.0
    %550 = vmatpush1.msra.mxu0 0.0
    %551 = vmatprep.subr.mxu0 0.0
    %552 = vmatpush1.msra.mxu0 0.0
    %553 = vmatprep.subr.mxu0 0.0
    %554 = vmatpush1.msra.mxu0 0.0
    %555 = vmatprep.subr.mxu0 0.0
    %556 = vmatpush1.msra.mxu0 0.0
    %557 = vmatprep.subr.mxu0 0.0
    %558 = vmatpush1.msra.mxu0 0.0
    %559 = vmatprep.subr.mxu0 0.0
    %560 = vmatpush1.msra.mxu0 0.0
    %561 = vmatprep.subr.mxu0 0.0
    %562 = vmatpush1.msra.mxu0 0.0
    %563 = vmatprep.subr.mxu0 0.0
    %564 = vmatpush1.msra.mxu0 0.0
    %565 = vmatprep.subr.mxu0 0.0
    %566 = vmatpush1.msra.mxu0 0.0
    %567 = vmatprep.subr.mxu0 0.0
    %568 = vmatpush1.msra.mxu0 0.0
    %569 = vmatprep.subr.mxu0 0.0
    %570 = vmatpush1.msra.mxu0 0.0
    %571 = vmatprep.subr.mxu0 0.0
    %572 = vmatpush1.msra.mxu0 0.0
    %573 = vmatprep.subr.mxu0 0.0
    %574 = vmatpush1.msra.mxu0 0.0
    %575 = vmatprep.subr.mxu0 0.0
    %576 = vmatpush1.msra.mxu0 0.0
    %577 = vmatprep.subr.mxu0 0.0
    %578 = vmatpush1.msra.mxu0 0.0
    %579 = vmatprep.subr.mxu0 0.0
    %580 = vmatpush1.msra.mxu0 0.0
    %581 = vmatprep.subr.mxu0 0.0
    %582 = vmatpush1.msra.mxu0 0.0
    %583 = vmatprep.subr.mxu0 0.0
    %584 = vmatpush1.msra.mxu0 0.0
    %585 = vmatprep.subr.mxu0 0.0
    %586 = vmatpush1.msra.mxu0 0.0
    %587 = vmatprep.subr.mxu0 0.0
    %588 = vmatpush1.msra.mxu0 0.0
    %589 = vmatprep.subr.mxu0 0.0
    %590 = vmatpush1.msra.mxu0 0.0
    %591 = vmatprep.mubr.f32.mxu0 0.0
    %592 = vmatmul.mubr.f32.gmra.mrb[0].mxu0 %v522
    %v593 = vpop.f32.mrb[0].mxu0
    %v594 = vadd.f32 0.0, %v593
    %v595 = vpop.f32.mrb[0].mxu0
    %596 = vmatprep.mubr.f32.mxu0 0.0
    %597 = vmatmul.mubr.f32.gmra.mrb[0].mxu0 %v525
    %v598 = vpop.f32.mrb[0].mxu0
    %v599 = vadd.f32 0.0, %v598
    %v600 = vpop.f32.mrb[0].mxu0
    %601 = vdwg.mxu0
    %602 = vmatprep.subr.mxu0 0.0
    %603 = vmatpush1.msra.mxu0 %v408
    %604 = vmatprep.subr.mxu0 0.0
    %605 = vmatpush1.msra.mxu0 %v409
    %606 = vmatprep.subr.mxu0 0.0
    %607 = vmatpush1.msra.mxu0 %v410
    %608 = vmatprep.subr.mxu0 0.0
    %609 = vmatpush1.msra.mxu0 %v411
    %610 = vmatprep.subr.mxu0 0.0
    %611 = vmatpush1.msra.mxu0 %v412
    %612 = vmatprep.subr.mxu0 0.0
    %613 = vmatpush1.msra.mxu0 %v413
    %614 = vmatprep.subr.mxu0 0.0
    %615 = vmatpush1.msra.mxu0 %v414
    %616 = vmatprep.subr.mxu0 0.0
    %617 = vmatpush1.msra.mxu0 %v415
    %618 = vmatprep.subr.mxu0 0.0
    %619 = vmatpush1.msra.mxu0 0.0
    %620 = vmatprep.subr.mxu0 0.0
    %621 = vmatpush1.msra.mxu0 0.0
    %622 = vmatprep.subr.mxu0 0.0
    %623 = vmatpush1.msra.mxu0 0.0
    %624 = vmatprep.subr.mxu0 0.0
    %625 = vmatpush1.msra.mxu0 0.0
    %626 = vmatprep.subr.mxu0 0.0
    %627 = vmatpush1.msra.mxu0 0.0
    %628 = vmatprep.subr.mxu0 0.0
    %629 = vmatpush1.msra.mxu0 0.0
    %630 = vmatprep.subr.mxu0 0.0
    %631 = vmatpush1.msra.mxu0 0.0
    %632 = vmatprep.subr.mxu0 0.0
    %633 = vmatpush1.msra.mxu0 0.0
    %634 = vmatprep.subr.mxu0 0.0
    %635 = vmatpush1.msra.mxu0 0.0
    %636 = vmatprep.subr.mxu0 0.0
    %637 = vmatpush1.msra.mxu0 0.0
    %638 = vmatprep.subr.mxu0 0.0
    %639 = vmatpush1.msra.mxu0 0.0
    %640 = vmatprep.subr.mxu0 0.0
    %641 = vmatpush1.msra.mxu0 0.0
    %642 = vmatprep.subr.mxu0 0.0
    %643 = vmatpush1.msra.mxu0 0.0
    %644 = vmatprep.subr.mxu0 0.0
    %645 = vmatpush1.msra.mxu0 0.0
    %646 = vmatprep.subr.mxu0 0.0
    %647 = vmatpush1.msra.mxu0 0.0
    %648 = vmatprep.subr.mxu0 0.0
    %649 = vmatpush1.msra.mxu0 0.0
    %650 = vmatprep.subr.mxu0 0.0
    %651 = vmatpush1.msra.mxu0 0.0
    %652 = vmatprep.subr.mxu0 0.0
    %653 = vmatpush1.msra.mxu0 0.0
    %654 = vmatprep.subr.mxu0 0.0
    %655 = vmatpush1.msra.mxu0 0.0
    %656 = vmatprep.subr.mxu0 0.0
    %657 = vmatpush1.msra.mxu0 0.0
    %658 = vmatprep.subr.mxu0 0.0
    %659 = vmatpush1.msra.mxu0 0.0
    %660 = vmatprep.subr.mxu0 0.0
    %661 = vmatpush1.msra.mxu0 0.0
    %662 = vmatprep.subr.mxu0 0.0
    %663 = vmatpush1.msra.mxu0 0.0
    %664 = vmatprep.subr.mxu0 0.0
    %665 = vmatpush1.msra.mxu0 0.0
    %666 = vmatprep.mubr.f32.mxu0 0.0
    %667 = vmatmul.mubr.f32.gmra.mrb[0].mxu0 %v522
    %v668 = vpop.f32.mrb[0].mxu0
    %v669 = vadd.f32 0.0, %v668
    %v670 = vpop.f32.mrb[0].mxu0
    %671 = vmatprep.mubr.f32.mxu0 0.0
    %672 = vmatmul.mubr.f32.gmra.mrb[0].mxu0 %v525
    %v673 = vpop.f32.mrb[0].mxu0
    %v674 = vadd.f32 0.0, %v673
    %v675 = vpop.f32.mrb[0].mxu0
    %676 = vdwg.mxu0
    %v677 = vrcp.pop %v669
    %v678 = vrcp.pop %v674
    %v679 = vmul.f32 %v594, %v677
    %v680 = vmul.f32 %v599, %v678
    %v681 = vmul.f32 %v206, %v408
    %v682 = vmul.f32 %v212, %v409
    %v683 = vmul.f32 %v206, %v410
    %v684 = vmul.f32 %v212, %v411
    %v685 = vmul.f32 %v206, %v412
    %v686 = vmul.f32 %v212, %v413
    %v687 = vmul.f32 %v206, %v414
    %v688 = vmul.f32 %v212, %v415
    %v689 = vmul.f32 %v291, %v408
    %v690 = vmul.f32 %v296, %v409
    %v691 = vmul.f32 %v291, %v410
    %v692 = vmul.f32 %v296, %v411
    %v693 = vmul.f32 %v291, %v412
    %v694 = vmul.f32 %v296, %v413
    %v695 = vmul.f32 %v291, %v414
    %v696 = vmul.f32 %v296, %v415
    %697 = vmatprep.subr.mxu0 0.0
    %698 = vmatpush1.xpose.msra.mxu0 %v681
    %699 = vmatprep.subr.mxu0 0.0
    %700 = vmatpush1.xpose.msra.mxu0 %v682
    %701 = vmatprep.subr.mxu0 0.0
    %702 = vmatpush1.xpose.msra.mxu0 %v683
    %703 = vmatprep.subr.mxu0 0.0
    %704 = vmatpush1.xpose.msra.mxu0 %v684
    %705 = vmatprep.subr.mxu0 0.0
    %706 = vmatpush1.xpose.msra.mxu0 %v685
    %707 = vmatprep.subr.mxu0 0.0
    %708 = vmatpush1.xpose.msra.mxu0 %v686
    %709 = vmatprep.subr.mxu0 0.0
    %710 = vmatpush1.xpose.msra.mxu0 %v687
    %711 = vmatprep.subr.mxu0 0.0
    %712 = vmatpush1.xpose.msra.mxu0 %v688
    %713 = vmatprep.subr.mxu0 0.0
    %714 = vmatpush1.xpose.msra.mxu0 0.0
    %715 = vmatprep.subr.mxu0 0.0
    %716 = vmatpush1.xpose.msra.mxu0 0.0
    %717 = vmatprep.subr.mxu0 0.0
    %718 = vmatpush1.xpose.msra.mxu0 0.0
    %719 = vmatprep.subr.mxu0 0.0
    %720 = vmatpush1.xpose.msra.mxu0 0.0
    %721 = vmatprep.subr.mxu0 0.0
    %722 = vmatpush1.xpose.msra.mxu0 0.0
    %723 = vmatprep.subr.mxu0 0.0
    %724 = vmatpush1.xpose.msra.mxu0 0.0
    %725 = vmatprep.subr.mxu0 0.0
    %726 = vmatpush1.xpose.msra.mxu0 0.0
    %727 = vmatprep.subr.mxu0 0.0
    %728 = vmatpush1.xpose.msra.mxu0 0.0
    %729 = vmatprep.subr.mxu0 0.0
    %730 = vmatpush1.xpose.msra.mxu0 0.0
    %731 = vmatprep.subr.mxu0 0.0
    %732 = vmatpush1.xpose.msra.mxu0 0.0
    %733 = vmatprep.subr.mxu0 0.0
    %734 = vmatpush1.xpose.msra.mxu0 0.0
    %735 = vmatprep.subr.mxu0 0.0
    %736 = vmatpush1.xpose.msra.mxu0 0.0
    %737 = vmatprep.subr.mxu0 0.0
    %738 = vmatpush1.xpose.msra.mxu0 0.0
    %739 = vmatprep.subr.mxu0 0.0
    %740 = vmatpush1.xpose.msra.mxu0 0.0
    %741 = vmatprep.subr.mxu0 0.0
    %742 = vmatpush1.xpose.msra.mxu0 0.0
    %743 = vmatprep.subr.mxu0 0.0
    %744 = vmatpush1.xpose.msra.mxu0 0.0
    %745 = vmatprep.subr.mxu0 0.0
    %746 = vmatpush1.xpose.msra.mxu0 0.0
    %747 = vmatprep.subr.mxu0 0.0
    %748 = vmatpush1.xpose.msra.mxu0 0.0
    %749 = vmatprep.subr.mxu0 0.0
    %750 = vmatpush1.xpose.msra.mxu0 0.0
    %751 = vmatprep.subr.mxu0 0.0
    %752 = vmatpush1.xpose.msra.mxu0 0.0
    %753 = vmatprep.subr.mxu0 0.0
    %754 = vmatpush1.xpose.msra.mxu0 0.0
    %755 = vmatprep.subr.mxu0 0.0
    %756 = vmatpush1.xpose.msra.mxu0 0.0
    %757 = vmatprep.subr.mxu0 0.0
    %758 = vmatpush1.xpose.msra.mxu0 0.0
    %759 = vmatprep.subr.mxu0 0.0
    %760 = vmatpush1.xpose.msra.mxu0 0.0
    %761 = vmatprep.mubr.f32.mxu0 0.0
    %762 = vmatmul.mubr.f32.gmra.mrb[0].mxu0 %v204
    %v763 = vpop.f32.mrb[0].mxu0
    %v764 = vadd.f32 0.0, %v763
    %v765 = vpop.f32.mrb[0].mxu0
    %766 = vmatprep.mubr.f32.mxu0 0.0
    %767 = vmatmul.mubr.f32.gmra.mrb[0].mxu0 %v210
    %v768 = vpop.f32.mrb[0].mxu0
    %v769 = vadd.f32 0.0, %v768
    %v770 = vpop.f32.mrb[0].mxu0
    %771 = vdwg.mxu0
    %v772 = vsel %vm314, %v764, -inf
    %v773 = vsel %vm315, %v769, -inf
    %v774 = vsel %vm112, %v772, -inf
    %775 = vmax.xlane.f32.xlu0 %v774
    %v776 = vpop.xlane.xlu0 %775
    %v777 = vsel %vm112, %v773, -inf
    %778 = vmax.xlane.f32.xlu0 %v777
    %v779 = vpop.xlane.xlu0 %778
    %v780 = vsub.f32 %v772, %v776
    %v781 = vsub.f32 %v773, %v779
    %v782 = vmul.f32 %v780, 1.442695
    %v783 = vpow.pop %v782
    %v784 = vmul.f32 %v781, 1.442695
    %v785 = vpow.pop %v784
    %v787 = vsel %vm112, %v783, 0
    %v790 = vsel %vm112, %v785, 0
    %792 = vmatprep.subr.mxu0 0.0
    %793 = vmatpush1.msra.mxu0 %v689
    %794 = vmatprep.subr.mxu0 0.0
    %795 = vmatpush1.msra.mxu0 %v690
    %796 = vmatprep.subr.mxu0 0.0
    %797 = vmatpush1.msra.mxu0 %v691
    %798 = vmatprep.subr.mxu0 0.0
    %799 = vmatpush1.msra.mxu0 %v692
    %800 = vmatprep.subr.mxu0 0.0
    %801 = vmatpush1.msra.mxu0 %v693
    %802 = vmatprep.subr.mxu0 0.0
    %803 = vmatpush1.msra.mxu0 %v694
    %804 = vmatprep.subr.mxu0 0.0
    %805 = vmatpush1.msra.mxu0 %v695
    %806 = vmatprep.subr.mxu0 0.0
    %807 = vmatpush1.msra.mxu0 %v696
    %808 = vmatprep.subr.mxu0 0.0
    %809 = vmatpush1.msra.mxu0 0.0
    %810 = vmatprep.subr.mxu0 0.0
    %811 = vmatpush1.msra.mxu0 0.0
    %812 = vmatprep.subr.mxu0 0.0
    %813 = vmatpush1.msra.mxu0 0.0
    %814 = vmatprep.subr.mxu0 0.0
    %815 = vmatpush1.msra.mxu0 0.0
    %816 = vmatprep.subr.mxu0 0.0
    %817 = vmatpush1.msra.mxu0 0.0
    %818 = vmatprep.subr.mxu0 0.0
    %819 = vmatpush1.msra.mxu0 0.0
    %820 = vmatprep.subr.mxu0 0.0
    %821 = vmatpush1.msra.mxu0 0.0
    %822 = vmatprep.subr.mxu0 0.0
    %823 = vmatpush1.msra.mxu0 0.0
    %824 = vmatprep.subr.mxu0 0.0
    %825 = vmatpush1.msra.mxu0 0.0
    %826 = vmatprep.subr.mxu0 0.0
    %827 = vmatpush1.msra.mxu0 0.0
    %828 = vmatprep.subr.mxu0 0.0
    %829 = vmatpush1.msra.mxu0 0.0
    %830 = vmatprep.subr.mxu0 0.0
    %831 = vmatpush1.msra.mxu0 0.0
    %832 = vmatprep.subr.mxu0 0.0
    %833 = vmatpush1.msra.mxu0 0.0
    %834 = vmatprep.subr.mxu0 0.0
    %835 = vmatpush1.msra.mxu0 0.0
    %836 = vmatprep.subr.mxu0 0.0
    %837 = vmatpush1.msra.mxu0 0.0
    %838 = vmatprep.subr.mxu0 0.0
    %839 = vmatpush1.msra.mxu0 0.0
    %840 = vmatprep.subr.mxu0 0.0
    %841 = vmatpush1.msra.mxu0 0.0
    %842 = vmatprep.subr.mxu0 0.0
    %843 = vmatpush1.msra.mxu0 0.0
    %844 = vmatprep.subr.mxu0 0.0
    %845 = vmatpush1.msra.mxu0 0.0
    %846 = vmatprep.subr.mxu0 0.0
    %847 = vmatpush1.msra.mxu0 0.0
    %848 = vmatprep.subr.mxu0 0.0
    %849 = vmatpush1.msra.mxu0 0.0
    %850 = vmatprep.subr.mxu0 0.0
    %851 = vmatpush1.msra.mxu0 0.0
    %852 = vmatprep.subr.mxu0 0.0
    %853 = vmatpush1.msra.mxu0 0.0
    %854 = vmatprep.subr.mxu0 0.0
    %855 = vmatpush1.msra.mxu0 0.0
    %856 = vmatprep.mubr.f32.mxu0 0.0
    %857 = vmatmul.mubr.f32.gmra.mrb[0].mxu0 %v787
    %v858 = vpop.f32.mrb[0].mxu0
    %v859 = vadd.f32 0.0, %v858
    %v860 = vpop.f32.mrb[0].mxu0
    %861 = vmatprep.mubr.f32.mxu0 0.0
    %862 = vmatmul.mubr.f32.gmra.mrb[0].mxu0 %v790
    %v863 = vpop.f32.mrb[0].mxu0
    %v864 = vadd.f32 0.0, %v863
    %v865 = vpop.f32.mrb[0].mxu0
    %866 = vdwg.mxu0
    %867 = vmatprep.subr.mxu0 0.0
    %868 = vmatpush1.msra.mxu0 %v408
    %869 = vmatprep.subr.mxu0 0.0
    %870 = vmatpush1.msra.mxu0 %v409
    %871 = vmatprep.subr.mxu0 0.0
    %872 = vmatpush1.msra.mxu0 %v410
    %873 = vmatprep.subr.mxu0 0.0
    %874 = vmatpush1.msra.mxu0 %v411
    %875 = vmatprep.subr.mxu0 0.0
    %876 = vmatpush1.msra.mxu0 %v412
    %877 = vmatprep.subr.mxu0 0.0
    %878 = vmatpush1.msra.mxu0 %v413
    %879 = vmatprep.subr.mxu0 0.0
    %880 = vmatpush1.msra.mxu0 %v414
    %881 = vmatprep.subr.mxu0 0.0
    %882 = vmatpush1.msra.mxu0 %v415
    %883 = vmatprep.subr.mxu0 0.0
    %884 = vmatpush1.msra.mxu0 0.0
    %885 = vmatprep.subr.mxu0 0.0
    %886 = vmatpush1.msra.mxu0 0.0
    %887 = vmatprep.subr.mxu0 0.0
    %888 = vmatpush1.msra.mxu0 0.0
    %889 = vmatprep.subr.mxu0 0.0
    %890 = vmatpush1.msra.mxu0 0.0
    %891 = vmatprep.subr.mxu0 0.0
    %892 = vmatpush1.msra.mxu0 0.0
    %893 = vmatprep.subr.mxu0 0.0
    %894 = vmatpush1.msra.mxu0 0.0
    %895 = vmatprep.subr.mxu0 0.0
    %896 = vmatpush1.msra.mxu0 0.0
    %897 = vmatprep.subr.mxu0 0.0
    %898 = vmatpush1.msra.mxu0 0.0
    %899 = vmatprep.subr.mxu0 0.0
    %900 = vmatpush1.msra.mxu0 0.0
    %901 = vmatprep.subr.mxu0 0.0
    %902 = vmatpush1.msra.mxu0 0.0
    %903 = vmatprep.subr.mxu0 0.0
    %904 = vmatpush1.msra.mxu0 0.0
    %905 = vmatprep.subr.mxu0 0.0
    %906 = vmatpush1.msra.mxu0 0.0
    %907 = vmatprep.subr.mxu0 0.0
    %908 = vmatpush1.msra.mxu0 0.0
    %909 = vmatprep.subr.mxu0 0.0
    %910 = vmatpush1.msra.mxu0 0.0
    %911 = vmatprep.subr.mxu0 0.0
    %912 = vmatpush1.msra.mxu0 0.0
    %913 = vmatprep.subr.mxu0 0.0
    %914 = vmatpush1.msra.mxu0 0.0
    %915 = vmatprep.subr.mxu0 0.0
    %916 = vmatpush1.msra.mxu0 0.0
    %917 = vmatprep.subr.mxu0 0.0
    %918 = vmatpush1.msra.mxu0 0.0
    %919 = vmatprep.subr.mxu0 0.0
    %920 = vmatpush1.msra.mxu0 0.0
    %921 = vmatprep.subr.mxu0 0.0
    %922 = vmatpush1.msra.mxu0 0.0
    %923 = vmatprep.subr.mxu0 0.0
    %924 = vmatpush1.msra.mxu0 0.0
    %925 = vmatprep.subr.mxu0 0.0
    %926 = vmatpush1.msra.mxu0 0.0
    %927 = vmatprep.subr.mxu0 0.0
    %928 = vmatpush1.msra.mxu0 0.0
    %929 = vmatprep.subr.mxu0 0.0
    %930 = vmatpush1.msra.mxu0 0.0
    %931 = vmatprep.mubr.f32.mxu0 0.0
    %932 = vmatmul.mubr.f32.gmra.mrb[0].mxu0 %v787
    %v933 = vpop.f32.mrb[0].mxu0
    %v934 = vadd.f32 0.0, %v933
    %v935 = vpop.f32.mrb[0].mxu0
    %936 = vmatprep.mubr.f32.mxu0 0.0
    %937 = vmatmul.mubr.f32.gmra.mrb[0].mxu0 %v790
    %v938 = vpop.f32.mrb[0].mxu0
    %v939 = vadd.f32 0.0, %v938
    %v940 = vpop.f32.mrb[0].mxu0
    %941 = vdwg.mxu0
    %v942 = vrcp.pop %v934
    %v943 = vrcp.pop %v939
    %v944 = vmul.f32 %v859, %v942
    %v945 = vmul.f32 %v864, %v943
    %v946 = vld [vmem:[%s2] sm:$0xff]
    %v947 = vld [vmem:[%s2 + $0x8] sm:$0xff]
    %v948 = vld [vmem:[%s2 + $0x10] sm:$0xff]
    %v949 = vld [vmem:[%s2 + $0x18] sm:$0xff]
    %v950 = vld [vmem:[%s2 + $0x20] sm:$0xff]
    %v951 = vld [vmem:[%s2 + $0x28] sm:$0xff]
    %v952 = vld [vmem:[%s2 + $0x30] sm:$0xff]
    %v953 = vld [vmem:[%s2 + $0x38] sm:$0xff]
    %v954 = vld [vmem:[%s2 + $0x40] sm:$0xff]
    %v955 = vld [vmem:[%s2 + $0x48] sm:$0xff]
    %v956 = vld [vmem:[%s2 + $0x50] sm:$0xff]
    %v957 = vld [vmem:[%s2 + $0x58] sm:$0xff]
    %v958 = vld [vmem:[%s2 + $0x60] sm:$0xff]
    %v959 = vld [vmem:[%s2 + $0x68] sm:$0xff]
    %v960 = vld [vmem:[%s2 + $0x70] sm:$0xff]
    %v961 = vld [vmem:[%s2 + $0x78] sm:$0xff]
    %v962 = vld [vmem:[%s2 + $0x80] sm:$0xff]
    %v963 = vld [vmem:[%s2 + $0x88] sm:$0xff]
    %v964 = vld [vmem:[%s2 + $0x90] sm:$0xff]
    %v965 = vld [vmem:[%s2 + $0x98] sm:$0xff]
    %v966 = vld [vmem:[%s2 + $0xa0] sm:$0xff]
    %v967 = vld [vmem:[%s2 + $0xa8] sm:$0xff]
    %v968 = vld [vmem:[%s2 + $0xb0] sm:$0xff]
    %v969 = vld [vmem:[%s2 + $0xb8] sm:$0xff]
    %v970 = vld [vmem:[%s2 + $0xc0] sm:$0xff]
    %v971 = vld [vmem:[%s2 + $0xc8] sm:$0xff]
    %v972 = vld [vmem:[%s2 + $0xd0] sm:$0xff]
    %v973 = vld [vmem:[%s2 + $0xd8] sm:$0xff]
    %v974 = vld [vmem:[%s2 + $0xe0] sm:$0xff]
    %v975 = vld [vmem:[%s2 + $0xe8] sm:$0xff]
    %v976 = vld [vmem:[%s2 + $0xf0] sm:$0xff]
    %v977 = vld [vmem:[%s2 + $0xf8] sm:$0xff]
    %v978 = vld [vmem:[%s3] sm:$0x3]
    %v980 = vlaneseq
    %v981 = vshrl.u32 %v980, 7
    %v982 = vsub.s32 0, %v981
    %v983 = vrot.slane %v978, %v982
    %v984 = vlaneseq
    %v985 = vshrl.u32 %v984, 7
    %v986 = vsub.s32 1, %v985
    %v987 = vrot.slane %v978, %v986
    %990 = vmatprep.subr.mxu0 %v947
    %991 = vmatpush1.msra.mxu0 %v946
    %992 = vmatprep.subr.mxu0 %v949
    %993 = vmatpush1.msra.mxu0 %v948
    %994 = vmatprep.subr.mxu0 %v951
    %995 = vmatpush1.msra.mxu0 %v950
    %996 = vmatprep.subr.mxu0 %v953
    %997 = vmatpush1.msra.mxu0 %v952
    %998 = vmatprep.subr.mxu0 %v955
    %999 = vmatpush1.msra.mxu0 %v954
    %1000 = vmatprep.subr.mxu0 %v957
    %1001 = vmatpush1.msra.mxu0 %v956
    %1002 = vmatprep.subr.mxu0 %v959
    %1003 = vmatpush1.msra.mxu0 %v958
    %1004 = vmatprep.subr.mxu0 %v961
    %1005 = vmatpush1.msra.mxu0 %v960
    %1006 = vmatprep.subr.mxu0 %v963
    %1007 = vmatpush1.msra.mxu0 %v962
    %1008 = vmatprep.subr.mxu0 %v965
    %1009 = vmatpush1.msra.mxu0 %v964
    %1010 = vmatprep.subr.mxu0 %v967
    %1011 = vmatpush1.msra.mxu0 %v966
    %1012 = vmatprep.subr.mxu0 %v969
    %1013 = vmatpush1.msra.mxu0 %v968
    %1014 = vmatprep.subr.mxu0 %v971
    %1015 = vmatpush1.msra.mxu0 %v970
    %1016 = vmatprep.subr.mxu0 %v973
    %1017 = vmatpush1.msra.mxu0 %v972
    %1018 = vmatprep.subr.mxu0 %v975
    %1019 = vmatpush1.msra.mxu0 %v974
    %1020 = vmatprep.subr.mxu0 %v977
    %1021 = vmatpush1.msra.mxu0 %v976
    %1022 = vmatprep.subr.mxu0 0.0
    %1023 = vmatpush1.msra.mxu0 0.0
    %1024 = vmatprep.subr.mxu0 0.0
    %1025 = vmatpush1.msra.mxu0 0.0
    %1026 = vmatprep.subr.mxu0 0.0
    %1027 = vmatpush1.msra.mxu0 0.0
    %1028 = vmatprep.subr.mxu0 0.0
    %1029 = vmatpush1.msra.mxu0 0.0
    %1030 = vmatprep.subr.mxu0 0.0
    %1031 = vmatpush1.msra.mxu0 0.0
    %1032 = vmatprep.subr.mxu0 0.0
    %1033 = vmatpush1.msra.mxu0 0.0
    %1034 = vmatprep.subr.mxu0 0.0
    %1035 = vmatpush1.msra.mxu0 0.0
    %1036 = vmatprep.subr.mxu0 0.0
    %1037 = vmatpush1.msra.mxu0 0.0
    %1038 = vmatprep.subr.mxu0 0.0
    %1039 = vmatpush1.msra.mxu0 0.0
    %1040 = vmatprep.subr.mxu0 0.0
    %1041 = vmatpush1.msra.mxu0 0.0
    %1042 = vmatprep.subr.mxu0 0.0
    %1043 = vmatpush1.msra.mxu0 0.0
    %1044 = vmatprep.subr.mxu0 0.0
    %1045 = vmatpush1.msra.mxu0 0.0
    %1046 = vmatprep.subr.mxu0 0.0
    %1047 = vmatpush1.msra.mxu0 0.0
    %1048 = vmatprep.subr.mxu0 0.0
    %1049 = vmatpush1.msra.mxu0 0.0
    %1050 = vmatprep.subr.mxu0 0.0
    %1051 = vmatpush1.msra.mxu0 0.0
    %1052 = vmatprep.subr.mxu0 0.0
    %1053 = vmatpush1.msra.mxu0 0.0
    %1054 = vmatprep.mubr.f32.mxu0 0.0
    %1055 = vmatmul.mubr.f32.gmra.mrb[0].mxu0 %v679
    %v1056 = vpop.f32.mrb[0].mxu0
    %v1057 = vadd.f32 %v983, %v1056
    %v1058 = vpop.f32.mrb[0].mxu0
    %v1059 = vadd.f32 %v987, %v1058
    %1060 = vmatprep.mubr.f32.mxu0 0.0
    %1061 = vmatmul.mubr.f32.gmra.mrb[0].mxu0 %v680
    %v1062 = vpop.f32.mrb[0].mxu0
    %v1063 = vadd.f32 %v983, %v1062
    %v1064 = vpop.f32.mrb[0].mxu0
    %v1065 = vadd.f32 %v987, %v1064
    %1066 = vmatprep.mubr.f32.mxu0 0.0
    %1067 = vmatmul.mubr.f32.gmra.mrb[0].mxu0 %v944
    %v1068 = vpop.f32.mrb[0].mxu0
    %v1069 = vadd.f32 %v983, %v1068
    %v1070 = vpop.f32.mrb[0].mxu0
    %v1071 = vadd.f32 %v987, %v1070
    %1072 = vmatprep.mubr.f32.mxu0 0.0
    %1073 = vmatmul.mubr.f32.gmra.mrb[0].mxu0 %v945
    %v1074 = vpop.f32.mrb[0].mxu0
    %v1075 = vadd.f32 %v983, %v1074
    %v1076 = vpop.f32.mrb[0].mxu0
    %v1077 = vadd.f32 %v987, %v1076
    %1078 = vdwg.mxu0
    %1079 = vst [vmem:[#allocation5] sm:$0xff] %v1057
    %1080 = vst.msk [vmem:[#allocation5 + $0x8] sm:$0xff] %vm112, %v1059
    %1081 = vst [vmem:[#allocation5 + $0x10] sm:$0xff] %v1063
    %1082 = vst.msk [vmem:[#allocation5 + $0x18] sm:$0xff] %vm112, %v1065
    %1083 = vst [vmem:[#allocation5 + $0x20] sm:$0xff] %v1069
    %1084 = vst.msk [vmem:[#allocation5 + $0x28] sm:$0xff] %vm112, %v1071
    %1085 = vst [vmem:[#allocation5 + $0x30] sm:$0xff] %v1075
    %1086 = vst.msk [vmem:[#allocation5 + $0x38] sm:$0xff] %vm112, %v1077
    // Predicated region
    $region22: #{multi_head_attention.1} parent=1 // pred_check
      _
    $region23: #{multi_head_attention.1} parent=1 // pred_check_branch
      %1088 = sbr.rel (0) target = $region25
    $region24: #{multi_head_attention.1} parent=1 // pred_region
      %s1090 = ssub.s32 1024, 1024
      %1091 = vsyncadd [#allocation4], %s1090
      %s1092 = sshll.u32 [#allocation5], 4
      %s1093 = int_to_ptr.vmem [resolvable:$true] %s1092
      %1098 = dma.vmem_to_hbm [thread:$0]  %s1093, 1024, %s4, [#allocation4], 256, 256, 16
    $region25: #{multi_head_attention.1} parent=1 // pred_fallthru
      _
    // Predicated region
    $region26: #{multi_head_attention.1} parent=1 // pred_check
      _
    $region27: #{multi_head_attention.1} parent=1 // pred_check_branch
      %1100 = sbr.rel (0) target = $region29
    $region28: #{multi_head_attention.1} parent=1 // pred_region
      %1101 = dma.done [#allocation4], 1024
    $region29: #{multi_head_attention.1} parent=1 // pred_fallthru
      _
    %1102 = vsyncpa [#allocation3], 1
    %1103 = vsyncpa [#allocation4], 1

</llo_original>
